<compile_context>
chip_gen: v6e
topology: v6e:2x2x1
jax: 0.10.0
libtpu: 0.0.40
codegen_flags: <defaults>
</compile_context>

<pallas_src>
import functools

import jax
import jax.numpy as jnp
from jax.experimental import pallas as pl
from jax.experimental.pallas import tpu as pltpu

RRELU_SLOPE = (1.0 / 8.0 + 1.0 / 3.0) / 2.0   # F.rrelu eval negative slope
BN_EPS = 1e-5
_VMEM_BUDGET = 20 * 1024 * 1024               # per-call tile budget (fits v7x)


# ------------------------------ Pallas kernel ------------------------------

def _conv_mm_kernel(*refs, act_slope, has_skip):
    """out[C_out, tm] = W[C_out, K] @ patches[K, tm] (+shift) (+skip) (rrelu)."""
    if has_skip:
        w_ref, p_ref, shift_ref, skip_ref, o_ref = refs
    else:
        w_ref, p_ref, shift_ref, o_ref = refs
        skip_ref = None
    acc = jnp.dot(w_ref[...], p_ref[...], preferred_element_type=jnp.float32)
    y = acc + shift_ref[...]                   # per-channel shift (f32)
    if has_skip:
        y = y + skip_ref[...]                  # fused residual add (f32)
    if act_slope is not None:
        y = jnp.where(y >= 0.0, y, y * act_slope)
    o_ref[...] = y.astype(o_ref.dtype)


def _pick_tile_m(m, k, cout, has_skip):
    # Largest lane tile that divides M and keeps double-buffered VMEM modest.
    for t in (2048, 1024, 512, 256, 128):
        if m % t != 0:
            continue
        vmem = 2 * (k * t * 2 + cout * t * 4 + (cout * t * 4 if has_skip else 0))
        vmem += cout * k * 2 + cout * 4
        if vmem <= _VMEM_BUDGET:
            return t
    return m          # single full block (block == full dim is always legal)


def conv_mm_pallas(wmat, patches, shift, skip=None, act_slope=None):
    """Fused conv-as-matmul: W[C_out,K] @ patches[K,M] + shift (+skip) (+rrelu)."""
    cout, k = wmat.shape
    m = patches.shape[1]
    tm = _pick_tile_m(m, k, cout, skip is not None)

    in_specs = [
        pl.BlockSpec((cout, k), lambda i: (0, 0)),    # weights: grid-invariant
        pl.BlockSpec((k, tm), lambda i: (0, i)),      # patch tile (M on lanes)
        pl.BlockSpec((cout, 1), lambda i: (0, 0)),    # per-channel shift
    ]
    args = [wmat.astype(jnp.bfloat16), patches.astype(jnp.bfloat16),
            shift.reshape(cout, 1).astype(jnp.float32)]
    if skip is not None:
        in_specs.append(pl.BlockSpec((cout, tm), lambda i: (0, i)))
        args.append(skip.astype(jnp.float32))

    kernel = functools.partial(_conv_mm_kernel, act_slope=act_slope,
                               has_skip=skip is not None)
    return pl.pallas_call(
        kernel,
        out_shape=jax.ShapeDtypeStruct((cout, m), jnp.float32),
        grid=(m // tm,),
        in_specs=in_specs,
        out_specs=pl.BlockSpec((cout, tm), lambda i: (0, i)),
        compiler_params=pltpu.CompilerParams(
            dimension_semantics=("parallel",),
            vmem_limit_bytes=32 * 1024 * 1024),
    )(*args)


# --------------------------- pure-JAX reference ----------------------------

def ref_conv_mm(wmat, patches, shift, skip=None, act_slope=None):
    acc = jnp.dot(wmat.astype(jnp.bfloat16), patches.astype(jnp.bfloat16),
                  preferred_element_type=jnp.float32)
    y = acc + shift.reshape(-1, 1)
    if skip is not None:
        y = y + skip
    if act_slope is not None:
        y = jnp.where(y >= 0.0, y, y * act_slope)
    return y


# ------------------------------- glue (JAX) --------------------------------

def im2col_3x3_cm(x):
    # x: [C, N, H, W] -> patches [9*C, N*H*W]   (padding=1, stride=1, 'same')
    # K ordering is (kh, kw)-major, C-minor, matching weight_3x3_cm.
    c, n, h, w = x.shape
    xp = jnp.pad(x, ((0, 0), (0, 0), (1, 1), (1, 1)))
    cols = [xp[:, :, dy:dy + h, dx:dx + w] for dy in range(3) for dx in range(3)]
    return jnp.stack(cols, axis=0).reshape(9 * c, n * h * w)


def weight_3x3_cm(w, scale=None):
    # torch weight [C_out, C_in, 3, 3] -> [C_out, 9*C_in]; optional row scale
    # folds the eval-mode BN gamma / sqrt(var + eps) into the weights.
    cout, cin = w.shape[0], w.shape[1]
    wm = jnp.transpose(w, (0, 2, 3, 1)).reshape(cout, 9 * cin)
    if scale is not None:
        wm = wm * scale[:, None]
    return wm


def avg_pool2_cm(x):
    c, n, h, w = x.shape
    return x.reshape(c, n, h // 2, 2, w // 2, 2).mean(axis=(3, 5))


def bn_fold(bias, bn):
    # eval-mode BatchNorm applied to the conv output: y = conv * scale + shift
    scale = bn['gamma'] / jnp.sqrt(bn['var'] + BN_EPS)
    shift = (bias - bn['mean']) * scale + bn['beta']
    return scale, shift


def res_down_forward(x_nchw, p, conv_fn=conv_mm_pallas):
    n, cin, h, w = x_nchw.shape
    x = jnp.transpose(x_nchw, (1, 0, 2, 3)).astype(jnp.float32)  # [C, N, H, W]

    # skip = conv3(AvgPool(x))           (bias only, no BN / activation)
    xp = avg_pool2_cm(x)
    skip = conv_fn(weight_3x3_cm(p['conv3_w']), im2col_3x3_cm(xp),
                   p['conv3_b'], None, None)                     # [C_out, M/4]

    # h = rrelu(BN1(conv1(x)))           (BN scale folded into weights)
    s1, t1 = bn_fold(p['conv1_b'], p['bn1'])
    h1 = conv_fn(weight_3x3_cm(p['conv1_w'], s1), im2col_3x3_cm(x),
                 t1, None, RRELU_SLOPE)                          # [C_out/2, M]
    h1 = avg_pool2_cm(h1.reshape(-1, n, h, w))

    # out = rrelu(BN2(conv2(h)) + skip)  (residual add + rrelu fused in kernel)
    s2, t2 = bn_fold(p['conv2_b'], p['bn2'])
    out = conv_fn(weight_3x3_cm(p['conv2_w'], s2), im2col_3x3_cm(h1),
                  t2, skip, RRELU_SLOPE)                         # [C_out, M/4]

    out = out.reshape(-1, n, h // 2, w // 2)
    return jnp.transpose(out, (1, 0, 2, 3))                      # back to NCHW


# ------------------------- deterministic parameters -------------------------

def init_resdown(key, cin, cout):
    ks = jax.random.split(key, 8)
    ch_half = cout // 2

    def conv_w(k, co, ci):
        return 0.1 * jax.random.normal(k, (co, ci, 3, 3), jnp.float32)

    def vec(k, nn):
        return 0.1 * jax.random.normal(k, (nn,), jnp.float32)

    def bn(k, nn):
        k1, k2, k3, k4 = jax.random.split(k, 4)
        return dict(
            gamma=1.0 + 0.1 * jax.random.normal(k1, (nn,), jnp.float32),
            beta=0.1 * jax.random.normal(k2, (nn,), jnp.float32),
            mean=0.1 * jax.random.normal(k3, (nn,), jnp.float32),
            var=0.9 + 0.1 * jax.random.uniform(k4, (nn,), jnp.float32),
        )

    return dict(
        conv1_w=conv_w(ks[0], ch_half, cin), conv1_b=vec(ks[1], ch_half),
        bn1=bn(ks[2], ch_half),
        conv2_w=conv_w(ks[3], cout, ch_half), conv2_b=vec(ks[4], cout),
        bn2=bn(ks[5], cout),
        conv3_w=conv_w(ks[6], cout, cin), conv3_b=vec(ks[7], cout),
    )


if __name__ == "__main__":
    channel_in, channel_out = 4, 32
    batch, hw = 2, 16

    key = jax.random.PRNGKey(0)
    k_in, k_p = jax.random.split(key)
    params = init_resdown(k_p, channel_in, channel_out)
    x = jax.random.normal(k_in, (batch, channel_in, hw, hw), jnp.float32)

    fwd = jax.jit(lambda xx, pp: res_down_forward(xx, pp, conv_mm_pallas))
    out = fwd(x, params)
    jax.block_until_ready(out)

    # sanity check against a pure-JAX reference of the same (bf16-matmul) math
    out_ref = res_down_forward(x, params, ref_conv_mm)
    assert out.shape == (batch, channel_out, hw // 2, hw // 2)
    max_err = jnp.max(jnp.abs(out - out_ref))
    assert jnp.allclose(out, out_ref, atol=2e-2, rtol=2e-2), f"max err {max_err}"

    print("KERNEL_OK")
</pallas_src>

<mosaic_0001>
module attributes {stable_mosaic.version = 11 : i64} {
  func.func @_conv_mm_kernel(%arg0: i32, %arg1: memref<16x36xbf16, #tpu.memory_space<vmem>>, %arg2: memref<36x512xbf16, #tpu.memory_space<vmem>>, %arg3: memref<16x1xf32, #tpu.memory_space<vmem>>, %arg4: memref<16x512xf32, #tpu.memory_space<vmem>>) attributes {dimension_semantics = [#tpu.dimension_semantics<parallel>], iteration_bounds = array<i64: 1>, scalar_prefetch = 0 : i64, scratch_operands = 0 : i64, tpu.core_type = #tpu.core_type<tc>, window_params = [{pipeline_mode = #tpu.pipeline_mode<synchronous>, transform_indices = @transform_0, window_bounds = array<i64: 16, 36>}, {transform_indices = @transform_1, window_bounds = array<i64: 36, 512>}, {pipeline_mode = #tpu.pipeline_mode<synchronous>, transform_indices = @transform_2, window_bounds = array<i64: 16, 1>}, {transform_indices = @transform_3, window_bounds = array<i64: 16, 512>}]} {
    %c0 = arith.constant 0 : index
    %c0_0 = arith.constant 0 : index
    %0 = vector.load %arg1[%c0, %c0_0] : memref<16x36xbf16, #tpu.memory_space<vmem>>, vector<16x36xbf16>
    %c0_1 = arith.constant 0 : index
    %c0_2 = arith.constant 0 : index
    %1 = vector.load %arg2[%c0_1, %c0_2] : memref<36x512xbf16, #tpu.memory_space<vmem>>, vector<36x512xbf16>
    %cst = arith.constant dense<0.000000e+00> : vector<16x512xf32>
    %2 = tpu.matmul %0, %1, %cst {dimension_numbers = #tpu.dot_dimension_numbers<[1], [0], [0], [1], [0, 0, 1, 1], [], []>} : vector<16x36xbf16>, vector<36x512xbf16>, vector<16x512xf32> -> vector<16x512xf32>
    %c0_3 = arith.constant 0 : index
    %c0_4 = arith.constant 0 : index
    %3 = vector.load %arg3[%c0_3, %c0_4] : memref<16x1xf32, #tpu.memory_space<vmem>>, vector<16x1xf32>
    %4 = vector.broadcast %3 : vector<16x1xf32> to vector<16x512xf32>
    %5 = arith.addf %2, %4 : vector<16x512xf32>
    %cst_5 = arith.constant 0.000000e+00 : f32
    %6 = vector.broadcast %cst_5 : f32 to vector<16x512xf32>
    %7 = arith.cmpf oge, %5, %6 : vector<16x512xf32>
    %cst_6 = arith.constant 0.229166672 : f32
    %8 = vector.broadcast %cst_6 : f32 to vector<16x512xf32>
    %9 = arith.mulf %5, %8 : vector<16x512xf32>
    %10 = arith.select %7, %5, %9 : vector<16x512xi1>, vector<16x512xf32>
    %c0_7 = arith.constant 0 : index
    %c0_8 = arith.constant 0 : index
    %11 = vector.load %arg4[%c0_7, %c0_8] : memref<16x512xf32, #tpu.memory_space<vmem>>, vector<16x512xf32>
    tpu.vector_store %arg4[%c0_7, %c0_8], %10 {strides = array<i32>} : memref<16x512xf32, #tpu.memory_space<vmem>>, vector<16x512xf32>,
    return
  }
  func.func @transform_0(%arg0: i32) -> (i32, i32) {
    %c0_i32 = arith.constant 0 : i32
    %c0_i32_0 = arith.constant 0 : i32
    %c0_i32_1 = arith.constant 0 : i32
    return %c0_i32, %c0_i32_0 : i32, i32
  }
  func.func @transform_1(%arg0: i32) -> (i32, i32) {
    %c0_i32 = arith.constant 0 : i32
    %c0_i32_0 = arith.constant 0 : i32
    return %c0_i32, %arg0 : i32, i32
  }
  func.func @transform_2(%arg0: i32) -> (i32, i32) {
    %c0_i32 = arith.constant 0 : i32
    %c0_i32_0 = arith.constant 0 : i32
    %c0_i32_1 = arith.constant 0 : i32
    return %c0_i32, %c0_i32_0 : i32, i32
  }
  func.func @transform_3(%arg0: i32) -> (i32, i32) {
    %c0_i32 = arith.constant 0 : i32
    %c0_i32_0 = arith.constant 0 : i32
    return %c0_i32, %arg0 : i32, i32
  }
}

module attributes {stable_mosaic.version = 11 : i64} {
  func.func @_conv_mm_kernel(%arg0: i32, %arg1: memref<32x36xbf16, #tpu.memory_space<vmem>>, %arg2: memref<36x128xbf16, #tpu.memory_space<vmem>>, %arg3: memref<32x1xf32, #tpu.memory_space<vmem>>, %arg4: memref<32x128xf32, #tpu.memory_space<vmem>>) attributes {dimension_semantics = [#tpu.dimension_semantics<parallel>], iteration_bounds = array<i64: 1>, scalar_prefetch = 0 : i64, scratch_operands = 0 : i64, tpu.core_type = #tpu.core_type<tc>, window_params = [{pipeline_mode = #tpu.pipeline_mode<synchronous>, transform_indices = @transform_0, window_bounds = array<i64: 32, 36>}, {transform_indices = @transform_1, window_bounds = array<i64: 36, 128>}, {pipeline_mode = #tpu.pipeline_mode<synchronous>, transform_indices = @transform_2, window_bounds = array<i64: 32, 1>}, {transform_indices = @transform_3, window_bounds = array<i64: 32, 128>}]} {
    %c0 = arith.constant 0 : index
    %c0_0 = arith.constant 0 : index
    %0 = vector.load %arg1[%c0, %c0_0] : memref<32x36xbf16, #tpu.memory_space<vmem>>, vector<32x36xbf16>
    %c0_1 = arith.constant 0 : index
    %c0_2 = arith.constant 0 : index
    %1 = vector.load %arg2[%c0_1, %c0_2] : memref<36x128xbf16, #tpu.memory_space<vmem>>, vector<36x128xbf16>
    %cst = arith.constant dense<0.000000e+00> : vector<32x128xf32>
    %2 = tpu.matmul %0, %1, %cst {dimension_numbers = #tpu.dot_dimension_numbers<[1], [0], [0], [1], [0, 0, 1, 1], [], []>} : vector<32x36xbf16>, vector<36x128xbf16>, vector<32x128xf32> -> vector<32x128xf32>
    %c0_3 = arith.constant 0 : index
    %c0_4 = arith.constant 0 : index
    %3 = vector.load %arg3[%c0_3, %c0_4] : memref<32x1xf32, #tpu.memory_space<vmem>>, vector<32x1xf32>
    %4 = vector.broadcast %3 : vector<32x1xf32> to vector<32x128xf32>
    %5 = arith.addf %2, %4 : vector<32x128xf32>
    %c0_5 = arith.constant 0 : index
    %c0_6 = arith.constant 0 : index
    %6 = vector.load %arg4[%c0_5, %c0_6] : memref<32x128xf32, #tpu.memory_space<vmem>>, vector<32x128xf32>
    tpu.vector_store %arg4[%c0_5, %c0_6], %5 {strides = array<i32>} : memref<32x128xf32, #tpu.memory_space<vmem>>, vector<32x128xf32>,
    return
  }
  func.func @transform_0(%arg0: i32) -> (i32, i32) {
    %c0_i32 = arith.constant 0 : i32
    %c0_i32_0 = arith.constant 0 : i32
    %c0_i32_1 = arith.constant 0 : i32
    return %c0_i32, %c0_i32_0 : i32, i32
  }
  func.func @transform_1(%arg0: i32) -> (i32, i32) {
    %c0_i32 = arith.constant 0 : i32
    %c0_i32_0 = arith.constant 0 : i32
    return %c0_i32, %arg0 : i32, i32
  }
  func.func @transform_2(%arg0: i32) -> (i32, i32) {
    %c0_i32 = arith.constant 0 : i32
    %c0_i32_0 = arith.constant 0 : i32
    %c0_i32_1 = arith.constant 0 : i32
    return %c0_i32, %c0_i32_0 : i32, i32
  }
  func.func @transform_3(%arg0: i32) -> (i32, i32) {
    %c0_i32 = arith.constant 0 : i32
    %c0_i32_0 = arith.constant 0 : i32
    return %c0_i32, %arg0 : i32, i32
  }
}

module attributes {stable_mosaic.version = 11 : i64} {
  func.func @_conv_mm_kernel(%arg0: i32, %arg1: memref<32x144xbf16, #tpu.memory_space<vmem>>, %arg2: memref<144x128xbf16, #tpu.memory_space<vmem>>, %arg3: memref<32x1xf32, #tpu.memory_space<vmem>>, %arg4: memref<32x128xf32, #tpu.memory_space<vmem>>, %arg5: memref<32x128xf32, #tpu.memory_space<vmem>>) attributes {dimension_semantics = [#tpu.dimension_semantics<parallel>], iteration_bounds = array<i64: 1>, scalar_prefetch = 0 : i64, scratch_operands = 0 : i64, tpu.core_type = #tpu.core_type<tc>, window_params = [{pipeline_mode = #tpu.pipeline_mode<synchronous>, transform_indices = @transform_0, window_bounds = array<i64: 32, 144>}, {transform_indices = @transform_1, window_bounds = array<i64: 144, 128>}, {pipeline_mode = #tpu.pipeline_mode<synchronous>, transform_indices = @transform_2, window_bounds = array<i64: 32, 1>}, {transform_indices = @transform_3, window_bounds = array<i64: 32, 128>}, {transform_indices = @transform_4, window_bounds = array<i64: 32, 128>}]} {
    %c0 = arith.constant 0 : index
    %c0_0 = arith.constant 0 : index
    %0 = vector.load %arg1[%c0, %c0_0] : memref<32x144xbf16, #tpu.memory_space<vmem>>, vector<32x144xbf16>
    %c0_1 = arith.constant 0 : index
    %c0_2 = arith.constant 0 : index
    %1 = vector.load %arg2[%c0_1, %c0_2] : memref<144x128xbf16, #tpu.memory_space<vmem>>, vector<144x128xbf16>
    %cst = arith.constant dense<0.000000e+00> : vector<32x128xf32>
    %2 = tpu.matmul %0, %1, %cst {dimension_numbers = #tpu.dot_dimension_numbers<[1], [0], [0], [1], [0, 0, 1, 1], [], []>} : vector<32x144xbf16>, vector<144x128xbf16>, vector<32x128xf32> -> vector<32x128xf32>
    %c0_3 = arith.constant 0 : index
    %c0_4 = arith.constant 0 : index
    %3 = vector.load %arg3[%c0_3, %c0_4] : memref<32x1xf32, #tpu.memory_space<vmem>>, vector<32x1xf32>
    %4 = vector.broadcast %3 : vector<32x1xf32> to vector<32x128xf32>
    %5 = arith.addf %2, %4 : vector<32x128xf32>
    %c0_5 = arith.constant 0 : index
    %c0_6 = arith.constant 0 : index
    %6 = vector.load %arg4[%c0_5, %c0_6] : memref<32x128xf32, #tpu.memory_space<vmem>>, vector<32x128xf32>
    %7 = arith.addf %5, %6 : vector<32x128xf32>
    %cst_7 = arith.constant 0.000000e+00 : f32
    %8 = vector.broadcast %cst_7 : f32 to vector<32x128xf32>
    %9 = arith.cmpf oge, %7, %8 : vector<32x128xf32>
    %cst_8 = arith.constant 0.229166672 : f32
    %10 = vector.broadcast %cst_8 : f32 to vector<32x128xf32>
    %11 = arith.mulf %7, %10 : vector<32x128xf32>
    %12 = arith.select %9, %7, %11 : vector<32x128xi1>, vector<32x128xf32>
    %c0_9 = arith.constant 0 : index
    %c0_10 = arith.constant 0 : index
    %13 = vector.load %arg5[%c0_9, %c0_10] : memref<32x128xf32, #tpu.memory_space<vmem>>, vector<32x128xf32>
    tpu.vector_store %arg5[%c0_9, %c0_10], %12 {strides = array<i32>} : memref<32x128xf32, #tpu.memory_space<vmem>>, vector<32x128xf32>,
    return
  }
  func.func @transform_0(%arg0: i32) -> (i32, i32) {
    %c0_i32 = arith.constant 0 : i32
    %c0_i32_0 = arith.constant 0 : i32
    %c0_i32_1 = arith.constant 0 : i32
    return %c0_i32, %c0_i32_0 : i32, i32
  }
  func.func @transform_1(%arg0: i32) -> (i32, i32) {
    %c0_i32 = arith.constant 0 : i32
    %c0_i32_0 = arith.constant 0 : i32
    return %c0_i32, %arg0 : i32, i32
  }
  func.func @transform_2(%arg0: i32) -> (i32, i32) {
    %c0_i32 = arith.constant 0 : i32
    %c0_i32_0 = arith.constant 0 : i32
    %c0_i32_1 = arith.constant 0 : i32
    return %c0_i32, %c0_i32_0 : i32, i32
  }
  func.func @transform_3(%arg0: i32) -> (i32, i32) {
    %c0_i32 = arith.constant 0 : i32
    %c0_i32_0 = arith.constant 0 : i32
    return %c0_i32, %arg0 : i32, i32
  }
  func.func @transform_4(%arg0: i32) -> (i32, i32) {
    %c0_i32 = arith.constant 0 : i32
    %c0_i32_0 = arith.constant 0 : i32
    return %c0_i32, %arg0 : i32, i32
  }
}

</mosaic_0001>

<llo_original>
// kernel: _lambda_.4
$region0: #{_lambda_.4}
  #allocation0 [shape = 'u32[]', space=smem, size = 0x4, offset = 0x4, fixed_abs, tag = 'smem constant byte address 0x4 - core index']
  #allocation1 [shape = 'u32[144,128]{1,0:T(1,128)}', space=vmem, size = 0x12000, scoped, tag = 'internal scratch']
  %s0 = inlined_call_operand.vmem [shape: bf16[16,36], index: 0, kind: input, shape index: {}]
  %s1 = inlined_call_operand.vmem [shape: bf16[36,512], index: 1, kind: input, shape index: {}]
  %s2 = inlined_call_operand.vmem [shape: f32[16,1], index: 2, kind: input, shape index: {}]
  %s3 = inlined_call_operand.vmem [shape: f32[16,512], index: 3, kind: output, shape index: {}]
  %s4 = sld [smem:[#allocation0]]
  $region22: #{_lambda_.4} parent=0
    _
  %s6 = ssub.s32 1, %s4
  %s7 = scalar_select 0, %s6, %s4
  // Predicated region
  $region2: #{_lambda_.4} parent=0 // pred_check
    _
  $region3: #{_lambda_.4} parent=0 // pred_check_branch
    %9 = sbr.rel (0) target = $region5
  $region4: #{_lambda_.4} parent=0 // pred_region
    _
  $region5: #{_lambda_.4} parent=0 // pred_fallthru
    _
  // Predicated region
  $region6: #{_lambda_.4} parent=0 // pred_check
    _
  $region7: #{_lambda_.4} parent=0 // pred_check_branch
    %11 = sbr.rel (0) target = $region9
  $region8: #{_lambda_.4} parent=0 // pred_region
    _
  $region9: #{_lambda_.4} parent=0 // pred_fallthru
    _
  // Predicated region
  $region10: #{_lambda_.4} parent=0 // pred_check
    _
  $region11: #{_lambda_.4} parent=0 // pred_check_branch
    %13 = sbr.rel (0) target = $region13
  $region12: #{_lambda_.4} parent=0 // pred_region
    _
  $region13: #{_lambda_.4} parent=0 // pred_fallthru
    _
  %v15 = vld [vmem:[%s0] sm:$0xf]
  %v16 = vld [vmem:[%s0 + $0x4] sm:$0xf]
  %v17 = vld [vmem:[%s1] sm:$0xff]
  %v18 = vld [vmem:[%s1 + $0x8] sm:$0xff]
  %v19 = vld [vmem:[%s1 + $0x10] sm:$0xff]
  %v20 = vld [vmem:[%s1 + $0x18] sm:$0xff]
  %v21 = vld [vmem:[%s1 + $0x20] sm:$0xff]
  %v22 = vld [vmem:[%s1 + $0x28] sm:$0xff]
  %v23 = vld [vmem:[%s1 + $0x30] sm:$0xff]
  %v24 = vld [vmem:[%s1 + $0x38] sm:$0xff]
  %v25 = vld [vmem:[%s1 + $0x40] sm:$0x33]
  %v26 = vld [vmem:[%s1 + $0x48] sm:$0x33]
  %v27 = vld [vmem:[%s2] sm:$0xff]
  %v28 = vld [vmem:[%s2 + $0x8] sm:$0xff]
  %30 = vset.pattern.permute.xlu0 0
  %31 = vperm.xlu0 %30, %v27
  %v32 = vpop.permute.xlu0 %31
  %35 = vset.pattern.permute.xlu0 0
  %36 = vperm.xlu0 %35, %v28
  %v37 = vpop.permute.xlu0 %36
  %v41 = vunpack.c.l.b16 %v15
  %v42 = vunpack.c.l.b16 %v16
  %v43 = vpack.c.b16 %v42, %v41
  %v54 = vunpack.c.l.b16 %v17
  %v55 = vunpack.c.h.b16 %v17
  %v56 = vunpack.c.l.b16 %v18
  %v57 = vunpack.c.h.b16 %v18
  %v58 = vunpack.c.l.b16 %v19
  %v59 = vunpack.c.h.b16 %v19
  %v60 = vunpack.c.l.b16 %v20
  %v61 = vunpack.c.h.b16 %v20
  %v62 = vunpack.c.l.b16 %v21
  %v63 = vunpack.c.h.b16 %v21
  %v64 = vunpack.c.l.b16 %v22
  %v65 = vunpack.c.h.b16 %v22
  %v66 = vunpack.c.l.b16 %v23
  %v67 = vunpack.c.h.b16 %v23
  %v68 = vunpack.c.l.b16 %v24
  %v69 = vunpack.c.h.b16 %v24
  %v70 = vunpack.c.l.b16 %v25
  %v71 = vunpack.c.h.b16 %v25
  %v72 = vunpack.c.l.b16 %v26
  %v73 = vunpack.c.h.b16 %v26
  %v74 = vpack.c.b16 %v58, %v54
  %v75 = vpack.c.b16 %v59, %v55
  %v76 = vpack.c.b16 %v60, %v56
  %v77 = vpack.c.b16 %v61, %v57
  %v78 = vpack.c.b16 %v66, %v62
  %v79 = vpack.c.b16 %v67, %v63
  %v80 = vpack.c.b16 %v68, %v64
  %v81 = vpack.c.b16 %v69, %v65
  %v82 = vpack.c.b16 %v70, %v70
  %v83 = vpack.c.b16 %v71, %v71
  %v84 = vpack.c.b16 %v72, %v72
  %v85 = vpack.c.b16 %v73, %v73
  %vm94 = vcmask 293888
  %v96 = vsel %vm94, %v43, 0
  %vm98 = vcmask 1041408
  %v100 = vsel %vm98, %v82, 0
  %v103 = vsel %vm98, %v83, 0
  %v106 = vsel %vm98, %v84, 0
  %v109 = vsel %vm98, %v85, 0
  %111 = vmatprep.subr.bf16.mxu0 0
  %112 = vmatpush1.bf16.msra.mxu0 0
  %113 = vmatprep.subr.bf16.mxu0 0
  %114 = vmatpush1.bf16.msra.mxu0 0
  %115 = vmatprep.subr.bf16.mxu0 0
  %116 = vmatpush1.bf16.msra.mxu0 0
  %117 = vmatprep.subr.bf16.mxu0 0
  %118 = vmatpush1.bf16.msra.mxu0 0
  %119 = vmatprep.subr.bf16.mxu0 0
  %120 = vmatpush1.bf16.msra.mxu0 0
  %121 = vmatprep.subr.bf16.mxu0 %v103
  %122 = vmatpush1.bf16.msra.mxu0 %v100
  %123 = vmatprep.subr.bf16.mxu0 %v79
  %124 = vmatpush1.bf16.msra.mxu0 %v78
  %125 = vmatprep.subr.bf16.mxu0 %v75
  %126 = vmatpush1.bf16.msra.mxu0 %v74
  %127 = vmatprep.subr.bf16.mxu0 0
  %128 = vmatpush2.bf16.msra.mxu0 0
  %129 = vmatprep.subr.bf16.mxu0 0
  %130 = vmatpush2.bf16.msra.mxu0 0
  %131 = vmatprep.subr.bf16.mxu0 0
  %132 = vmatpush2.bf16.msra.mxu0 0
  %133 = vmatprep.subr.bf16.mxu0 0
  %134 = vmatpush2.bf16.msra.mxu0 0
  %135 = vmatprep.subr.bf16.mxu0 0
  %136 = vmatpush2.bf16.msra.mxu0 0
  %137 = vmatprep.subr.bf16.mxu0 0
  %138 = vmatpush2.bf16.msra.mxu0 0
  %139 = vmatprep.subr.bf16.mxu0 0
  %140 = vmatpush2.bf16.msra.mxu0 0
  %141 = vmatprep.subr.bf16.mxu0 0
  %142 = vmatpush2.bf16.msra.mxu0 0
  %143 = vmatprep.mubr.bf16.mxu0 0
  %144 = vmatmul.mubr.bf16.gmra.mxu0 %v96
  %v145 = vpop.f32.mrf.mxu0
  %v146 = vadd.f32 %v32, %v145
  %v147 = vpop.f32.mrf.mxu0
  %v148 = vadd.f32 %v32, %v147
  %v149 = vpop.f32.mrf.mxu0
  %v150 = vadd.f32 %v37, %v149
  %v151 = vpop.f32.mrf.mxu0
  %v152 = vadd.f32 %v37, %v151
  %153 = vdwg.mxu0
  %154 = vmatprep.subr.bf16.mxu0 0
  %155 = vmatpush1.bf16.msra.mxu0 0
  %156 = vmatprep.subr.bf16.mxu0 0
  %157 = vmatpush1.bf16.msra.mxu0 0
  %158 = vmatprep.subr.bf16.mxu0 0
  %159 = vmatpush1.bf16.msra.mxu0 0
  %160 = vmatprep.subr.bf16.mxu0 0
  %161 = vmatpush1.bf16.msra.mxu0 0
  %162 = vmatprep.subr.bf16.mxu0 0
  %163 = vmatpush1.bf16.msra.mxu0 0
  %164 = vmatprep.subr.bf16.mxu0 %v109
  %165 = vmatpush1.bf16.msra.mxu0 %v106
  %166 = vmatprep.subr.bf16.mxu0 %v81
  %167 = vmatpush1.bf16.msra.mxu0 %v80
  %168 = vmatprep.subr.bf16.mxu0 %v77
  %169 = vmatpush1.bf16.msra.mxu0 %v76
  %170 = vmatprep.subr.bf16.mxu0 0
  %171 = vmatpush2.bf16.msra.mxu0 0
  %172 = vmatprep.subr.bf16.mxu0 0
  %173 = vmatpush2.bf16.msra.mxu0 0
  %174 = vmatprep.subr.bf16.mxu0 0
  %175 = vmatpush2.bf16.msra.mxu0 0
  %176 = vmatprep.subr.bf16.mxu0 0
  %177 = vmatpush2.bf16.msra.mxu0 0
  %178 = vmatprep.subr.bf16.mxu0 0
  %179 = vmatpush2.bf16.msra.mxu0 0
  %180 = vmatprep.subr.bf16.mxu0 0
  %181 = vmatpush2.bf16.msra.mxu0 0
  %182 = vmatprep.subr.bf16.mxu0 0
  %183 = vmatpush2.bf16.msra.mxu0 0
  %184 = vmatprep.subr.bf16.mxu0 0
  %185 = vmatpush2.bf16.msra.mxu0 0
  %186 = vmatprep.mubr.bf16.mxu0 0
  %187 = vmatmul.mubr.bf16.gmra.mxu0 %v96
  %v188 = vpop.f32.mrf.mxu0
  %v189 = vadd.f32 %v32, %v188
  %v190 = vpop.f32.mrf.mxu0
  %v191 = vadd.f32 %v32, %v190
  %v192 = vpop.f32.mrf.mxu0
  %v193 = vadd.f32 %v37, %v192
  %v194 = vpop.f32.mrf.mxu0
  %v195 = vadd.f32 %v37, %v194
  %196 = vdwg.mxu0
  %vm197 = vcmp.ge.f32.partialorder %v146, 0.0
  %vm198 = vcmp.ge.f32.partialorder %v148, 0.0
  %vm199 = vcmp.ge.f32.partialorder %v189, 0.0
  %vm200 = vcmp.ge.f32.partialorder %v191, 0.0
  %vm201 = vcmp.ge.f32.partialorder %v150, 0.0
  %vm202 = vcmp.ge.f32.partialorder %v152, 0.0
  %vm203 = vcmp.ge.f32.partialorder %v193, 0.0
  %vm204 = vcmp.ge.f32.partialorder %v195, 0.0
  %v205 = vmul.f32 %v146, 0.22916667
  %v206 = vmul.f32 %v148, 0.22916667
  %v207 = vmul.f32 %v189, 0.22916667
  %v208 = vmul.f32 %v191, 0.22916667
  %v209 = vmul.f32 %v150, 0.22916667
  %v210 = vmul.f32 %v152, 0.22916667
  %v211 = vmul.f32 %v193, 0.22916667
  %v212 = vmul.f32 %v195, 0.22916667
  %v213 = vsel %vm197, %v146, %v205
  %v214 = vsel %vm198, %v148, %v206
  %v215 = vsel %vm199, %v189, %v207
  %v216 = vsel %vm200, %v191, %v208
  %v217 = vsel %vm201, %v150, %v209
  %v218 = vsel %vm202, %v152, %v210
  %v219 = vsel %vm203, %v193, %v211
  %v220 = vsel %vm204, %v195, %v212
  %221 = vst [vmem:[%s3] sm:$0xff] %v213
  %222 = vst [vmem:[%s3 + $0x8] sm:$0xff] %v214
  %223 = vst [vmem:[%s3 + $0x10] sm:$0xff] %v215
  %224 = vst [vmem:[%s3 + $0x18] sm:$0xff] %v216
  %225 = vst [vmem:[%s3 + $0x20] sm:$0xff] %v217
  %226 = vst [vmem:[%s3 + $0x28] sm:$0xff] %v218
  %227 = vst [vmem:[%s3 + $0x30] sm:$0xff] %v219
  %228 = vst [vmem:[%s3 + $0x38] sm:$0xff] %v220
  // Predicated region
  $region14: #{_lambda_.4} parent=0 // pred_check
    _
  $region15: #{_lambda_.4} parent=0 // pred_check_branch
    %230 = sbr.rel (0) target = $region17
  $region16: #{_lambda_.4} parent=0 // pred_region
    _
  $region17: #{_lambda_.4} parent=0 // pred_fallthru
    _
  // Predicated region
  $region18: #{_lambda_.4} parent=0 // pred_check
    _
  $region19: #{_lambda_.4} parent=0 // pred_check_branch
    %232 = sbr.rel (0) target = $region21
  $region20: #{_lambda_.4} parent=0 // pred_region
    _
  $region21: #{_lambda_.4} parent=0 // pred_fallthru
    _

// kernel: _lambda_.3
$region0: #{_lambda_.3}
  #allocation0 [shape = 'u32[]', space=smem, size = 0x4, offset = 0x4, fixed_abs, tag = 'smem constant byte address 0x4 - core index']
  #allocation1 [shape = 'u32[144,128]{1,0:T(1,128)}', space=vmem, size = 0x12000, scoped, tag = 'internal scratch']
  %s0 = inlined_call_operand.vmem [shape: bf16[32,36], index: 0, kind: input, shape index: {}]
  %s1 = inlined_call_operand.vmem [shape: bf16[36,128], index: 1, kind: input, shape index: {}]
  %s2 = inlined_call_operand.vmem [shape: f32[32,1], index: 2, kind: input, shape index: {}]
  %s3 = inlined_call_operand.vmem [shape: f32[32,128], index: 3, kind: output, shape index: {}]
  %s4 = sld [smem:[#allocation0]]
  $region22: #{_lambda_.3} parent=0
    _
  %s6 = ssub.s32 1, %s4
  %s7 = scalar_select 0, %s6, %s4
  // Predicated region
  $region2: #{_lambda_.3} parent=0 // pred_check
    _
  $region3: #{_lambda_.3} parent=0 // pred_check_branch
    %9 = sbr.rel (0) target = $region5
  $region4: #{_lambda_.3} parent=0 // pred_region
    _
  $region5: #{_lambda_.3} parent=0 // pred_fallthru
    _
  // Predicated region
  $region6: #{_lambda_.3} parent=0 // pred_check
    _
  $region7: #{_lambda_.3} parent=0 // pred_check_branch
    %11 = sbr.rel (0) target = $region9
  $region8: #{_lambda_.3} parent=0 // pred_region
    _
  $region9: #{_lambda_.3} parent=0 // pred_fallthru
    _
  // Predicated region
  $region10: #{_lambda_.3} parent=0 // pred_check
    _
  $region11: #{_lambda_.3} parent=0 // pred_check_branch
    %13 = sbr.rel (0) target = $region13
  $region12: #{_lambda_.3} parent=0 // pred_region
    _
  $region13: #{_lambda_.3} parent=0 // pred_fallthru
    _
  %v15 = vld [vmem:[%s0] sm:$0xf]
  %v16 = vld [vmem:[%s0 + $0x4] sm:$0xf]
  %v17 = vld [vmem:[%s0 + $0x8] sm:$0xf]
  %v18 = vld [vmem:[%s0 + $0xc] sm:$0xf]
  %v19 = vld [vmem:[%s1] sm:$0xf]
  %v20 = vld [vmem:[%s1 + $0x4] sm:$0xf]
  %v21 = vld [vmem:[%s1 + $0x8] sm:$0xf]
  %v22 = vld [vmem:[%s1 + $0xc] sm:$0xf]
  %v23 = vld [vmem:[%s1 + $0x10] sm:$0x3]
  %v24 = vld [vmem:[%s2] sm:$0xff]
  %v25 = vld [vmem:[%s2 + $0x8] sm:$0xff]
  %v26 = vld [vmem:[%s2 + $0x10] sm:$0xff]
  %v27 = vld [vmem:[%s2 + $0x18] sm:$0xff]
  %29 = vset.pattern.permute.xlu0 0
  %30 = vperm.xlu0 %29, %v24
  %v31 = vpop.permute.xlu0 %30
  %34 = vset.pattern.permute.xlu0 0
  %35 = vperm.xlu0 %34, %v25
  %v36 = vpop.permute.xlu0 %35
  %39 = vset.pattern.permute.xlu0 0
  %40 = vperm.xlu0 %39, %v26
  %v41 = vpop.permute.xlu0 %40
  %44 = vset.pattern.permute.xlu0 0
  %45 = vperm.xlu0 %44, %v27
  %v46 = vpop.permute.xlu0 %45
  %v52 = vunpack.c.l.b16 %v15
  %v53 = vunpack.c.l.b16 %v16
  %v54 = vunpack.c.l.b16 %v17
  %v55 = vunpack.c.l.b16 %v18
  %v56 = vpack.c.b16 %v53, %v52
  %v57 = vpack.c.b16 %v55, %v54
  %v63 = vunpack.c.l.b16 %v19
  %v64 = vunpack.c.l.b16 %v20
  %v65 = vunpack.c.l.b16 %v21
  %v66 = vunpack.c.l.b16 %v22
  %v67 = vunpack.c.l.b16 %v23
  %v68 = vpack.c.b16 %v64, %v63
  %v69 = vpack.c.b16 %v66, %v65
  %v70 = vpack.c.b16 %v67, %v67
  %vm73 = vcmask 293888
  %v75 = vsel %vm73, %v56, 0
  %v78 = vsel %vm73, %v57, 0
  %vm80 = vcmask 1041408
  %v82 = vsel %vm80, %v70, 0
  %84 = vmatprep.subr.bf16.mxu0 0
  %85 = vmatpush1.bf16.msra.mxu0 0
  %86 = vmatprep.subr.bf16.mxu0 0
  %87 = vmatpush1.bf16.msra.mxu0 0
  %88 = vmatprep.subr.bf16.mxu0 0
  %89 = vmatpush1.bf16.msra.mxu0 0
  %90 = vmatprep.subr.bf16.mxu0 0
  %91 = vmatpush1.bf16.msra.mxu0 0
  %92 = vmatprep.subr.bf16.mxu0 0
  %93 = vmatpush1.bf16.msra.mxu0 0
  %94 = vmatprep.subr.bf16.mxu0 0
  %95 = vmatpush1.bf16.msra.mxu0 %v82
  %96 = vmatprep.subr.bf16.mxu0 0
  %97 = vmatpush1.bf16.msra.mxu0 %v69
  %98 = vmatprep.subr.bf16.mxu0 0
  %99 = vmatpush1.bf16.msra.mxu0 %v68
  %100 = vmatprep.subr.bf16.mxu0 0
  %101 = vmatpush2.bf16.msra.mxu0 0
  %102 = vmatprep.subr.bf16.mxu0 0
  %103 = vmatpush2.bf16.msra.mxu0 0
  %104 = vmatprep.subr.bf16.mxu0 0
  %105 = vmatpush2.bf16.msra.mxu0 0
  %106 = vmatprep.subr.bf16.mxu0 0
  %107 = vmatpush2.bf16.msra.mxu0 0
  %108 = vmatprep.subr.bf16.mxu0 0
  %109 = vmatpush2.bf16.msra.mxu0 0
  %110 = vmatprep.subr.bf16.mxu0 0
  %111 = vmatpush2.bf16.msra.mxu0 0
  %112 = vmatprep.subr.bf16.mxu0 0
  %113 = vmatpush2.bf16.msra.mxu0 0
  %114 = vmatprep.subr.bf16.mxu0 0
  %115 = vmatpush2.bf16.msra.mxu0 0
  %116 = vmatprep.mubr.bf16.mxu0 0
  %117 = vmatmul.mubr.bf16.gmra.mxu0 %v75
  %v118 = vpop.f32.mrf.mxu0
  %v119 = vadd.f32 %v31, %v118
  %v120 = vpop.f32.mrf.mxu0
  %v121 = vpop.f32.mrf.mxu0
  %v122 = vadd.f32 %v36, %v121
  %v123 = vpop.f32.mrf.mxu0
  %124 = vmatprep.mubr.bf16.mxu0 0
  %125 = vmatmul.mubr.bf16.gmra.mxu0 %v78
  %v126 = vpop.f32.mrf.mxu0
  %v127 = vadd.f32 %v41, %v126
  %v128 = vpop.f32.mrf.mxu0
  %v129 = vpop.f32.mrf.mxu0
  %v130 = vadd.f32 %v46, %v129
  %v131 = vpop.f32.mrf.mxu0
  %132 = vdwg.mxu0
  %133 = vst [vmem:[%s3] sm:$0xff] %v119
  %134 = vst [vmem:[%s3 + $0x8] sm:$0xff] %v122
  %135 = vst [vmem:[%s3 + $0x10] sm:$0xff] %v127
  %136 = vst [vmem:[%s3 + $0x18] sm:$0xff] %v130
  // Predicated region
  $region14: #{_lambda_.3} parent=0 // pred_check
    _
  $region15: #{_lambda_.3} parent=0 // pred_check_branch
    %138 = sbr.rel (0) target = $region17
  $region16: #{_lambda_.3} parent=0 // pred_region
    _
  $region17: #{_lambda_.3} parent=0 // pred_fallthru
    _
  // Predicated region
  $region18: #{_lambda_.3} parent=0 // pred_check
    _
  $region19: #{_lambda_.3} parent=0 // pred_check_branch
    %140 = sbr.rel (0) target = $region21
  $region20: #{_lambda_.3} parent=0 // pred_region
    _
  $region21: #{_lambda_.3} parent=0 // pred_fallthru
    _

// kernel: _lambda_.5
$region0: #{_lambda_.5}
  #allocation0 [shape = 'u32[]', space=smem, size = 0x4, offset = 0x4, fixed_abs, tag = 'smem constant byte address 0x4 - core index']
  #allocation1 [shape = 'u32[144,128]{1,0:T(1,128)}', space=vmem, size = 0x12000, scoped, tag = 'internal scratch']
  %s0 = inlined_call_operand.vmem [shape: bf16[32,144], index: 0, kind: input, shape index: {}]
  %s1 = inlined_call_operand.vmem [shape: bf16[144,128], index: 1, kind: input, shape index: {}]
  %s2 = inlined_call_operand.vmem [shape: f32[32,1], index: 2, kind: input, shape index: {}]
  %s3 = inlined_call_operand.vmem [shape: f32[32,128], index: 3, kind: input, shape index: {}]
  %s4 = inlined_call_operand.vmem [shape: f32[32,128], index: 4, kind: output, shape index: {}]
  %s5 = sld [smem:[#allocation0]]
  $region26: #{_lambda_.5} parent=0
    _
  %s7 = ssub.s32 1, %s5
  %s8 = scalar_select 0, %s7, %s5
  // Predicated region
  $region2: #{_lambda_.5} parent=0 // pred_check
    _
  $region3: #{_lambda_.5} parent=0 // pred_check_branch
    %10 = sbr.rel (0) target = $region5
  $region4: #{_lambda_.5} parent=0 // pred_region
    _
  $region5: #{_lambda_.5} parent=0 // pred_fallthru
    _
  // Predicated region
  $region6: #{_lambda_.5} parent=0 // pred_check
    _
  $region7: #{_lambda_.5} parent=0 // pred_check_branch
    %12 = sbr.rel (0) target = $region9
  $region8: #{_lambda_.5} parent=0 // pred_region
    _
  $region9: #{_lambda_.5} parent=0 // pred_fallthru
    _
  // Predicated region
  $region10: #{_lambda_.5} parent=0 // pred_check
    _
  $region11: #{_lambda_.5} parent=0 // pred_check_branch
    %14 = sbr.rel (0) target = $region13
  $region12: #{_lambda_.5} parent=0 // pred_region
    _
  $region13: #{_lambda_.5} parent=0 // pred_fallthru
    _
  // Predicated region
  $region14: #{_lambda_.5} parent=0 // pred_check
    _
  $region15: #{_lambda_.5} parent=0 // pred_check_branch
    %16 = sbr.rel (0) target = $region17
  $region16: #{_lambda_.5} parent=0 // pred_region
    _
  $region17: #{_lambda_.5} parent=0 // pred_fallthru
    _
  %v18 = vld [vmem:[%s0] sm:$0xff]
  %v19 = vld [vmem:[%s0 + $0x8] sm:$0xff]
  %v20 = vld [vmem:[%s0 + $0x10] sm:$0xff]
  %v21 = vld [vmem:[%s0 + $0x18] sm:$0xff]
  %v22 = vld [vmem:[%s1] sm:$0xf]
  %v23 = vld [vmem:[%s1 + $0x4] sm:$0xf]
  %v24 = vld [vmem:[%s1 + $0x8] sm:$0xf]
  %v25 = vld [vmem:[%s1 + $0xc] sm:$0xf]
  %v26 = vld [vmem:[%s1 + $0x10] sm:$0xf]
  %v27 = vld [vmem:[%s1 + $0x14] sm:$0xf]
  %v28 = vld [vmem:[%s1 + $0x18] sm:$0xf]
  %v29 = vld [vmem:[%s1 + $0x1c] sm:$0xf]
  %v30 = vld [vmem:[%s1 + $0x20] sm:$0xf]
  %v31 = vld [vmem:[%s1 + $0x24] sm:$0xf]
  %v32 = vld [vmem:[%s1 + $0x28] sm:$0xf]
  %v33 = vld [vmem:[%s1 + $0x2c] sm:$0xf]
  %v34 = vld [vmem:[%s1 + $0x30] sm:$0xf]
  %v35 = vld [vmem:[%s1 + $0x34] sm:$0xf]
  %v36 = vld [vmem:[%s1 + $0x38] sm:$0xf]
  %v37 = vld [vmem:[%s1 + $0x3c] sm:$0xf]
  %v38 = vld [vmem:[%s1 + $0x40] sm:$0xf]
  %v39 = vld [vmem:[%s1 + $0x44] sm:$0xf]
  %v40 = vld [vmem:[%s2] sm:$0xff]
  %v41 = vld [vmem:[%s2 + $0x8] sm:$0xff]
  %v42 = vld [vmem:[%s2 + $0x10] sm:$0xff]
  %v43 = vld [vmem:[%s2 + $0x18] sm:$0xff]
  %45 = vset.pattern.permute.xlu0 0
  %46 = vperm.xlu0 %45, %v40
  %v47 = vpop.permute.xlu0 %46
  %50 = vset.pattern.permute.xlu0 0
  %51 = vperm.xlu0 %50, %v41
  %v52 = vpop.permute.xlu0 %51
  %55 = vset.pattern.permute.xlu0 0
  %56 = vperm.xlu0 %55, %v42
  %v57 = vpop.permute.xlu0 %56
  %60 = vset.pattern.permute.xlu0 0
  %61 = vperm.xlu0 %60, %v43
  %v62 = vpop.permute.xlu0 %61
  %v68 = vunpack.c.l.b16 %v18
  %v69 = vunpack.c.h.b16 %v18
  %v70 = vunpack.c.l.b16 %v19
  %v71 = vunpack.c.h.b16 %v19
  %v72 = vunpack.c.l.b16 %v20
  %v73 = vunpack.c.h.b16 %v20
  %v74 = vunpack.c.l.b16 %v21
  %v75 = vunpack.c.h.b16 %v21
  %v76 = vpack.c.b16 %v70, %v68
  %v77 = vpack.c.b16 %v71, %v69
  %v78 = vpack.c.b16 %v74, %v72
  %v79 = vpack.c.b16 %v75, %v73
  %v100 = vunpack.c.l.b16 %v22
  %v101 = vunpack.c.l.b16 %v23
  %v102 = vunpack.c.l.b16 %v24
  %v103 = vunpack.c.l.b16 %v25
  %v104 = vunpack.c.l.b16 %v26
  %v105 = vunpack.c.l.b16 %v27
  %v106 = vunpack.c.l.b16 %v28
  %v107 = vunpack.c.l.b16 %v29
  %v108 = vunpack.c.l.b16 %v30
  %v109 = vunpack.c.l.b16 %v31
  %v110 = vunpack.c.l.b16 %v32
  %v111 = vunpack.c.l.b16 %v33
  %v112 = vunpack.c.l.b16 %v34
  %v113 = vunpack.c.l.b16 %v35
  %v114 = vunpack.c.l.b16 %v36
  %v115 = vunpack.c.l.b16 %v37
  %v116 = vunpack.c.l.b16 %v38
  %v117 = vunpack.c.l.b16 %v39
  %v118 = vpack.c.b16 %v101, %v100
  %v119 = vpack.c.b16 %v103, %v102
  %v120 = vpack.c.b16 %v105, %v104
  %v121 = vpack.c.b16 %v107, %v106
  %v122 = vpack.c.b16 %v109, %v108
  %v123 = vpack.c.b16 %v111, %v110
  %v124 = vpack.c.b16 %v113, %v112
  %v125 = vpack.c.b16 %v115, %v114
  %v126 = vpack.c.b16 %v117, %v116
  %vm136 = vcmask 130048
  %v138 = vsel %vm136, %v77, 0
  %v141 = vsel %vm136, %v79, 0
  %143 = vmatprep.subr.bf16.mxu0 0
  %144 = vmatpush1.bf16.msra.mxu0 %v125
  %145 = vmatprep.subr.bf16.mxu0 0
  %146 = vmatpush1.bf16.msra.mxu0 %v124
  %147 = vmatprep.subr.bf16.mxu0 0
  %148 = vmatpush1.bf16.msra.mxu0 %v123
  %149 = vmatprep.subr.bf16.mxu0 0
  %150 = vmatpush1.bf16.msra.mxu0 %v122
  %151 = vmatprep.subr.bf16.mxu0 0
  %152 = vmatpush1.bf16.msra.mxu0 %v121
  %153 = vmatprep.subr.bf16.mxu0 0
  %154 = vmatpush1.bf16.msra.mxu0 %v120
  %155 = vmatprep.subr.bf16.mxu0 0
  %156 = vmatpush1.bf16.msra.mxu0 %v119
  %157 = vmatprep.subr.bf16.mxu0 0
  %158 = vmatpush1.bf16.msra.mxu0 %v118
  %159 = vmatprep.subr.bf16.mxu0 0
  %160 = vmatpush2.bf16.msra.mxu0 0
  %161 = vmatprep.subr.bf16.mxu0 0
  %162 = vmatpush2.bf16.msra.mxu0 0
  %163 = vmatprep.subr.bf16.mxu0 0
  %164 = vmatpush2.bf16.msra.mxu0 0
  %165 = vmatprep.subr.bf16.mxu0 0
  %166 = vmatpush2.bf16.msra.mxu0 0
  %167 = vmatprep.subr.bf16.mxu0 0
  %168 = vmatpush2.bf16.msra.mxu0 0
  %169 = vmatprep.subr.bf16.mxu0 0
  %170 = vmatpush2.bf16.msra.mxu0 0
  %171 = vmatprep.subr.bf16.mxu0 0
  %172 = vmatpush2.bf16.msra.mxu0 0
  %173 = vmatprep.subr.bf16.mxu0 0
  %174 = vmatpush2.bf16.msra.mxu0 %v126
  %175 = vmatprep.mubr.bf16.mxu0 %v138
  %176 = vmatmul.mubr.bf16.gmra.mxu0 %v76
  %v177 = vpop.f32.mrf.mxu0
  %v178 = vadd.f32 %v47, %v177
  %v179 = vpop.f32.mrf.mxu0
  %v180 = vpop.f32.mrf.mxu0
  %v181 = vadd.f32 %v52, %v180
  %v182 = vpop.f32.mrf.mxu0
  %183 = vmatprep.mubr.bf16.mxu0 %v141
  %184 = vmatmul.mubr.bf16.gmra.mxu0 %v78
  %v185 = vpop.f32.mrf.mxu0
  %v186 = vadd.f32 %v57, %v185
  %v187 = vpop.f32.mrf.mxu0
  %v188 = vpop.f32.mrf.mxu0
  %v189 = vadd.f32 %v62, %v188
  %v190 = vpop.f32.mrf.mxu0
  %191 = vdwg.mxu0
  %v192 = vld [vmem:[%s3] sm:$0xff]
  %v193 = vld [vmem:[%s3 + $0x8] sm:$0xff]
  %v194 = vld [vmem:[%s3 + $0x10] sm:$0xff]
  %v195 = vld [vmem:[%s3 + $0x18] sm:$0xff]
  %v196 = vadd.f32 %v178, %v192
  %v197 = vadd.f32 %v181, %v193
  %v198 = vadd.f32 %v186, %v194
  %v199 = vadd.f32 %v189, %v195
  %vm200 = vcmp.ge.f32.partialorder %v196, 0.0
  %vm201 = vcmp.ge.f32.partialorder %v197, 0.0
  %vm202 = vcmp.ge.f32.partialorder %v198, 0.0
  %vm203 = vcmp.ge.f32.partialorder %v199, 0.0
  %v204 = vmul.f32 %v196, 0.22916667
  %v205 = vmul.f32 %v197, 0.22916667
  %v206 = vmul.f32 %v198, 0.22916667
  %v207 = vmul.f32 %v199, 0.22916667
  %v208 = vsel %vm200, %v196, %v204
  %v209 = vsel %vm201, %v197, %v205
  %v210 = vsel %vm202, %v198, %v206
  %v211 = vsel %vm203, %v199, %v207
  %212 = vst [vmem:[%s4] sm:$0xff] %v208
  %213 = vst [vmem:[%s4 + $0x8] sm:$0xff] %v209
  %214 = vst [vmem:[%s4 + $0x10] sm:$0xff] %v210
  %215 = vst [vmem:[%s4 + $0x18] sm:$0xff] %v211
  // Predicated region
  $region18: #{_lambda_.5} parent=0 // pred_check
    _
  $region19: #{_lambda_.5} parent=0 // pred_check_branch
    %217 = sbr.rel (0) target = $region21
  $region20: #{_lambda_.5} parent=0 // pred_region
    _
  $region21: #{_lambda_.5} parent=0 // pred_fallthru
    _
  // Predicated region
  $region22: #{_lambda_.5} parent=0 // pred_check
    _
  $region23: #{_lambda_.5} parent=0 // pred_check_branch
    %219 = sbr.rel (0) target = $region25
  $region24: #{_lambda_.5} parent=0 // pred_region
    _
  $region25: #{_lambda_.5} parent=0 // pred_fallthru
    _

</llo_original>
